<compile_context>
chip_gen: v7x
topology: tpu7x:2x2x1
jax: 0.10.0
libtpu: 0.0.40
codegen_flags: <defaults>
</compile_context>

<pallas_src>
import jax
import jax.numpy as jnp
from jax.experimental import pallas as pl
from jax.experimental.pallas import tpu as pltpu

LEAKY_SLOPE = 0.01  # nn.LeakyReLU default negative_slope


def _round_up(x, m):
    return ((x + m - 1) // m) * m


def lrbp_kernel(x1_ref, x2_ref, w1_ref, w2_ref, w_ref, b_ref, o_ref):
    # Weights are pre-transposed in the wrapper to [in, out] and already in the
    # compute dtype; x tiles are cast per-tile (no extra HBM pass in wrapper).
    cdt = w1_ref.dtype
    x1 = x1_ref[...].astype(cdt)
    x2 = x2_ref[...].astype(cdt)

    h1 = jnp.dot(x1, w1_ref[...], preferred_element_type=jnp.float32)
    h1 = jnp.maximum(h1, LEAKY_SLOPE * h1)          # LeakyReLU, 2 VALU ops/elem
    h2 = jnp.dot(x2, w2_ref[...], preferred_element_type=jnp.float32)
    h2 = jnp.maximum(h2, LEAKY_SLOPE * h2)

    fused = (h1 * h2).astype(cdt)
    out = jnp.dot(fused, w_ref[...], preferred_element_type=jnp.float32)
    out = out + b_ref[...]                          # bias kept in f32
    o_ref[...] = out.astype(o_ref.dtype)


def low_rank_bilinear_pooling(x1, x2, w1, w2, w, b, *,
                              compute_dtype=jnp.bfloat16, tm=None):
    """x1, x2: [B, S, H]; w1, w2, w: [H, H] PyTorch [out, in] layout; b: [H]."""
    B, S, H = x1.shape
    M = B * S
    out_dtype = x1.dtype
    in_size = jnp.dtype(x1.dtype).itemsize
    out_size = jnp.dtype(out_dtype).itemsize
    cdt = jnp.dtype(compute_dtype)

    # Lane-align hidden dim (last dim -> multiple of 128 lanes).
    Hp = _round_up(H, 128)

    # --- one-time weight prep: pad -> transpose to [in, out] -> compute dtype ---
    if Hp != H:
        wpad = ((0, Hp - H), (0, Hp - H))
        w1 = jnp.pad(w1, wpad)
        w2 = jnp.pad(w2, wpad)
        w = jnp.pad(w, wpad)
        b = jnp.pad(b, (0, Hp - H))
    w1t = w1.T.astype(cdt)
    w2t = w2.T.astype(cdt)
    wt = w.T.astype(cdt)
    b2 = b.reshape(1, Hp).astype(jnp.float32)

    # --- activations: flatten rows; only column padding (no M-axis pad/slice) ---
    x1f = x1.reshape(M, H)
    x2f = x2.reshape(M, H)
    if Hp != H:
        cpad = ((0, 0), (0, Hp - H))
        x1f = jnp.pad(x1f, cpad)
        x2f = jnp.pad(x2f, cpad)

    # --- VMEM-budgeted row tile ---
    try:
        vmem_bytes = int(pltpu.get_tpu_info().vmem_capacity_bytes)
    except Exception:  # interpret mode / older runtimes
        vmem_bytes = 64 * 1024 * 1024
    budget = vmem_bytes // 2
    # Pallas double-buffers even constant-index_map inputs -> account weights 2x.
    weight_bytes = 2 * (3 * Hp * Hp * cdt.itemsize + Hp * 4)
    per_row = (2 * 2 * Hp * in_size        # double-buffered x1/x2 stream tiles
               + 2 * Hp * out_size         # double-buffered output tile
               + 6 * Hp * 4)               # f32 intermediates (h1, h2, fused, out, slack)
    if tm is None:
        avail = budget - weight_bytes
        tm = avail // per_row if avail > per_row else 8
        tm = int(min(4096, max(8, tm)))
        # give the "parallel" M axis >= 2 grid steps so both v7x TCs get work
        tm = min(tm, _round_up(pl.cdiv(M, 2), 8))
    tm = int(max(8, min(int(tm), _round_up(M, 8))))
    tm = max(8, (tm // 8) * 8)

    grid = (pl.cdiv(M, tm),)  # partial last block masked by Pallas
    row_spec = pl.BlockSpec((tm, Hp), lambda i: (i, 0))
    wt_spec = pl.BlockSpec((Hp, Hp), lambda i: (0, 0))   # resident across steps
    b_spec = pl.BlockSpec((1, Hp), lambda i: (0, 0))

    cost = pl.CostEstimate(
        flops=6 * M * Hp * Hp,
        transcendentals=0,
        bytes_accessed=M * Hp * (2 * in_size + out_size)
        + 3 * Hp * Hp * cdt.itemsize + Hp * 4,
    )

    out = pl.pallas_call(
        lrbp_kernel,
        out_shape=jax.ShapeDtypeStruct((M, Hp), out_dtype),
        grid=grid,
        in_specs=[row_spec, row_spec, wt_spec, wt_spec, wt_spec, b_spec],
        out_specs=row_spec,
        compiler_params=pltpu.CompilerParams(
            dimension_semantics=("parallel",),
            vmem_limit_bytes=int(vmem_bytes * 3 // 4),
        ),
        cost_estimate=cost,
    )(x1f, x2f, w1t, w2t, wt, b2)

    if Hp != H:
        out = out[:, :H]
    return out.reshape(B, S, H)


def _reference(x1, x2, w1, w2, w, b):
    def lrelu(v):
        return jnp.where(v >= 0, v, LEAKY_SLOPE * v)
    h1 = lrelu(jnp.einsum("bsh,oh->bso", x1, w1))
    h2 = lrelu(jnp.einsum("bsh,oh->bso", x2, w2))
    return jnp.einsum("bsh,oh->bso", h1 * h2, w) + b


if __name__ == "__main__":
    B, S, H = 2, 8, 32
    key = jax.random.PRNGKey(0)
    kx1, kx2, kw1, kw2, kw, kb = jax.random.split(key, 6)

    x1 = jax.random.normal(kx1, (B, S, H), dtype=jnp.float32)
    x2 = jax.random.normal(kx2, (B, S, H), dtype=jnp.float32)

    # Deterministic synthetic parameters (PyTorch Linear weight layout: [out, in]).
    scale = 1.0 / jnp.sqrt(H)
    w1 = jax.random.uniform(kw1, (H, H), minval=-scale, maxval=scale, dtype=jnp.float32)
    w2 = jax.random.uniform(kw2, (H, H), minval=-scale, maxval=scale, dtype=jnp.float32)
    w = jax.random.uniform(kw, (H, H), minval=-scale, maxval=scale, dtype=jnp.float32)
    b = jax.random.uniform(kb, (H,), minval=-scale, maxval=scale, dtype=jnp.float32)

    ref = _reference(x1, x2, w1, w2, w, b)

    # Exact-precision path (f32 matmuls) — tight tolerance check.
    out_f32 = low_rank_bilinear_pooling(x1, x2, w1, w2, w, b,
                                        compute_dtype=jnp.float32)
    out_f32 = jax.block_until_ready(out_f32)
    assert out_f32.shape == (B, S, H)
    assert jnp.allclose(out_f32, ref, atol=1e-4, rtol=1e-4), "f32 mismatch vs reference"

    # Default fast path (bf16 matmuls, f32 accumulation) — loose tolerance check.
    out_bf16 = low_rank_bilinear_pooling(x1, x2, w1, w2, w, b)
    out_bf16 = jax.block_until_ready(out_bf16)
    assert out_bf16.shape == (B, S, H)
    assert jnp.allclose(out_bf16, ref, atol=5e-2, rtol=5e-2), "bf16 mismatch vs reference"

    print("KERNEL_OK")
</pallas_src>

<mosaic_0001>
module attributes {stable_mosaic.version = 11 : i64} {
  func.func @lrbp_kernel(%arg0: i32, %arg1: memref<8x128xf32, #tpu.memory_space<vmem>>, %arg2: memref<8x128xf32, #tpu.memory_space<vmem>>, %arg3: memref<128x128xf32, #tpu.memory_space<vmem>>, %arg4: memref<128x128xf32, #tpu.memory_space<vmem>>, %arg5: memref<128x128xf32, #tpu.memory_space<vmem>>, %arg6: memref<1x128xf32, #tpu.memory_space<vmem>>, %arg7: memref<8x128xf32, #tpu.memory_space<vmem>>) attributes {dimension_semantics = [#tpu.dimension_semantics<parallel>], iteration_bounds = array<i64: 2>, scalar_prefetch = 0 : i64, scratch_operands = 0 : i64, tpu.core_type = #tpu.core_type<tc>, window_params = [{transform_indices = @transform_0, window_bounds = array<i64: 8, 128>}, {transform_indices = @transform_1, window_bounds = array<i64: 8, 128>}, {pipeline_mode = #tpu.pipeline_mode<synchronous>, transform_indices = @transform_2, window_bounds = array<i64: 128, 128>}, {pipeline_mode = #tpu.pipeline_mode<synchronous>, transform_indices = @transform_3, window_bounds = array<i64: 128, 128>}, {pipeline_mode = #tpu.pipeline_mode<synchronous>, transform_indices = @transform_4, window_bounds = array<i64: 128, 128>}, {pipeline_mode = #tpu.pipeline_mode<synchronous>, transform_indices = @transform_5, window_bounds = array<i64: 1, 128>}, {transform_indices = @transform_6, window_bounds = array<i64: 8, 128>}]} {
    %c0 = arith.constant 0 : index
    %c0_0 = arith.constant 0 : index
    %0 = vector.load %arg1[%c0, %c0_0] : memref<8x128xf32, #tpu.memory_space<vmem>>, vector<8x128xf32>
    %c0_1 = arith.constant 0 : index
    %c0_2 = arith.constant 0 : index
    %1 = vector.load %arg2[%c0_1, %c0_2] : memref<8x128xf32, #tpu.memory_space<vmem>>, vector<8x128xf32>
    %c0_3 = arith.constant 0 : index
    %c0_4 = arith.constant 0 : index
    %2 = vector.load %arg3[%c0_3, %c0_4] : memref<128x128xf32, #tpu.memory_space<vmem>>, vector<128x128xf32>
    %cst = arith.constant dense<0.000000e+00> : vector<8x128xf32>
    %3 = tpu.matmul %0, %2, %cst {dimension_numbers = #tpu.dot_dimension_numbers<[1], [0], [0], [1], [0, 0, 1, 1], [], []>} : vector<8x128xf32>, vector<128x128xf32>, vector<8x128xf32> -> vector<8x128xf32>
    %cst_5 = arith.constant 0.00999999977 : f32
    %4 = vector.broadcast %cst_5 : f32 to vector<8x128xf32>
    %5 = arith.mulf %4, %3 : vector<8x128xf32>
    %6 = arith.maximumf %3, %5 : vector<8x128xf32>
    %c0_6 = arith.constant 0 : index
    %c0_7 = arith.constant 0 : index
    %7 = vector.load %arg4[%c0_6, %c0_7] : memref<128x128xf32, #tpu.memory_space<vmem>>, vector<128x128xf32>
    %cst_8 = arith.constant dense<0.000000e+00> : vector<8x128xf32>
    %8 = tpu.matmul %1, %7, %cst_8 {dimension_numbers = #tpu.dot_dimension_numbers<[1], [0], [0], [1], [0, 0, 1, 1], [], []>} : vector<8x128xf32>, vector<128x128xf32>, vector<8x128xf32> -> vector<8x128xf32>
    %cst_9 = arith.constant 0.00999999977 : f32
    %9 = vector.broadcast %cst_9 : f32 to vector<8x128xf32>
    %10 = arith.mulf %9, %8 : vector<8x128xf32>
    %11 = arith.maximumf %8, %10 : vector<8x128xf32>
    %12 = arith.mulf %6, %11 : vector<8x128xf32>
    %c0_10 = arith.constant 0 : index
    %c0_11 = arith.constant 0 : index
    %13 = vector.load %arg5[%c0_10, %c0_11] : memref<128x128xf32, #tpu.memory_space<vmem>>, vector<128x128xf32>
    %cst_12 = arith.constant dense<0.000000e+00> : vector<8x128xf32>
    %14 = tpu.matmul %12, %13, %cst_12 {dimension_numbers = #tpu.dot_dimension_numbers<[1], [0], [0], [1], [0, 0, 1, 1], [], []>} : vector<8x128xf32>, vector<128x128xf32>, vector<8x128xf32> -> vector<8x128xf32>
    %c0_13 = arith.constant 0 : index
    %c0_14 = arith.constant 0 : index
    %15 = vector.load %arg6[%c0_13, %c0_14] : memref<1x128xf32, #tpu.memory_space<vmem>>, vector<1x128xf32>
    %16 = vector.broadcast %15 : vector<1x128xf32> to vector<8x128xf32>
    %17 = arith.addf %14, %16 : vector<8x128xf32>
    %c0_15 = arith.constant 0 : index
    %c0_16 = arith.constant 0 : index
    %18 = vector.load %arg7[%c0_15, %c0_16] : memref<8x128xf32, #tpu.memory_space<vmem>>, vector<8x128xf32>
    tpu.vector_store %arg7[%c0_15, %c0_16], %17 {strides = array<i32>} : memref<8x128xf32, #tpu.memory_space<vmem>>, vector<8x128xf32>,
    return
  }
  func.func @transform_0(%arg0: i32) -> (i32, i32) {
    %c0_i32 = arith.constant 0 : i32
    %c0_i32_0 = arith.constant 0 : i32
    return %arg0, %c0_i32 : i32, i32
  }
  func.func @transform_1(%arg0: i32) -> (i32, i32) {
    %c0_i32 = arith.constant 0 : i32
    %c0_i32_0 = arith.constant 0 : i32
    return %arg0, %c0_i32 : i32, i32
  }
  func.func @transform_2(%arg0: i32) -> (i32, i32) {
    %c0_i32 = arith.constant 0 : i32
    %c0_i32_0 = arith.constant 0 : i32
    %c0_i32_1 = arith.constant 0 : i32
    return %c0_i32, %c0_i32_0 : i32, i32
  }
  func.func @transform_3(%arg0: i32) -> (i32, i32) {
    %c0_i32 = arith.constant 0 : i32
    %c0_i32_0 = arith.constant 0 : i32
    %c0_i32_1 = arith.constant 0 : i32
    return %c0_i32, %c0_i32_0 : i32, i32
  }
  func.func @transform_4(%arg0: i32) -> (i32, i32) {
    %c0_i32 = arith.constant 0 : i32
    %c0_i32_0 = arith.constant 0 : i32
    %c0_i32_1 = arith.constant 0 : i32
    return %c0_i32, %c0_i32_0 : i32, i32
  }
  func.func @transform_5(%arg0: i32) -> (i32, i32) {
    %c0_i32 = arith.constant 0 : i32
    %c0_i32_0 = arith.constant 0 : i32
    %c0_i32_1 = arith.constant 0 : i32
    return %c0_i32, %c0_i32_0 : i32, i32
  }
  func.func @transform_6(%arg0: i32) -> (i32, i32) {
    %c0_i32 = arith.constant 0 : i32
    %c0_i32_0 = arith.constant 0 : i32
    return %arg0, %c0_i32 : i32, i32
  }
}

</mosaic_0001>

<llo_original>
// kernel: tpu_custom_call.1
$region0: #{tpu_custom_call.1}
  #allocation0 [shape = 'u32[]', space=smem, size = 0x4, offset = 0x4, fixed_abs, tag = 'smem constant byte address 0x4 - core index']
  #allocation1 [shape = 'u32[144,128]{1,0:T(1,128)}', space=vmem, size = 0x12000, scoped, tag = 'internal scratch']
  %s0 = inlined_call_operand.hbm [shape: f32[16,128], index: 0, kind: input, shape index: {}]
  %s1 = inlined_call_operand.hbm [shape: f32[16,128], index: 1, kind: input, shape index: {}]
  %s2 = inlined_call_operand.hbm [shape: f32[128,128], index: 2, kind: input, shape index: {}]
  %s3 = inlined_call_operand.hbm [shape: f32[128,128], index: 3, kind: input, shape index: {}]
  %s4 = inlined_call_operand.hbm [shape: f32[128,128], index: 4, kind: input, shape index: {}]
  %s5 = inlined_call_operand.vmem [shape: f32[1,128], index: 5, kind: input, shape index: {}]
  %s6 = inlined_call_operand.hbm [shape: f32[16,128], index: 6, kind: output, shape index: {}]
  %s7 = sld [smem:[#allocation0]]
  $region77: #{tpu_custom_call.1} parent=0
    _
  %s9 = ssub.s32 1, %s7
  %s10 = scalar_select 0, %s9, %s7
  $region1: #{tpu_custom_call.1} parent=0
    #allocation2 [shape = 'u8[8192]{0}', space=vmem, size = 0x2000, scoped, tag = 'input window, operand 0']
    #allocation3 [shape = 's32[2]{0}', space=sflag, size = 0x8, scoped, tag = 'scoped memory for tpu_custom_call.1']
    #allocation4 [shape = 's32[2]{0}', space=sflag, size = 0x8, scoped, tag = 'scoped memory for tpu_custom_call.1']
    #allocation5 [shape = 'u8[8192]{0}', space=vmem, size = 0x2000, scoped, tag = 'input window, operand 1']
    #allocation6 [shape = 's32[2]{0}', space=sflag, size = 0x8, scoped, tag = 'scoped memory for tpu_custom_call.1']
    #allocation7 [shape = 'u8[65536]{0}', space=vmem, size = 0x10000, scoped, tag = 'input window, operand 2, single buffered']
    #allocation8 [shape = 'u8[65536]{0}', space=vmem, size = 0x10000, scoped, tag = 'input window, operand 3, single buffered']
    #allocation9 [shape = 's32[1]{0}', space=sflag, size = 0x4, scoped, tag = 'scoped memory for tpu_custom_call.1']
    #allocation10 [shape = 'u8[65536]{0}', space=vmem, size = 0x10000, scoped, tag = 'input window, operand 4, single buffered']
    #allocation11 [shape = 'u8[8192]{0}', space=vmem, size = 0x2000, scoped, tag = 'output window, operand 0']
    %11 = vsyncpa [#allocation3], 0
    %s12 = scalar_lea.sflag [#allocation3], 1
    %13 = vsyncpa %s12, 0
    %14 = vsyncpa [#allocation6], 0
    %s15 = scalar_lea.sflag [#allocation6], 1
    %16 = vsyncpa %s15, 0
    %17 = vsyncpa [#allocation9], 0
    %18 = vsyncpa [#allocation4], 0
    %s19 = scalar_lea.sflag [#allocation4], 1
    %20 = vsyncpa %s19, 0
    loop: start=0, step=1, limit=4
    $region2: #{tpu_custom_call.1} parent=1 // loop_pre_header
      _
    $region3: #{tpu_custom_call.1} parent=1 // loop_header
      %s22 = sphi 0, %s26
      %p23 = scmp.ge.s32.totalorder %s22, 4
      %s32 = sphi 0, %s34
      %s35 = sphi 0, %s32
      %s36 = sphi 0, %s35
      %s52 = sphi 0, %s36
      %s58 = sphi 0, %s60
      %s61 = sphi 0, %s58
      %s62 = sphi 0, %s61
      %s78 = sphi 0, %s62
      %s82 = sphi 0, %s82
      %s84 = sphi 0, %s82
      %s85 = sphi 0, %s84
      %s99 = sphi 0, %s85
      %s103 = sphi 0, %s103
      %s105 = sphi 0, %s103
      %s106 = sphi 0, %s105
      %s120 = sphi 0, %s106
      %s124 = sphi 0, %s124
      %s126 = sphi 0, %s124
      %s127 = sphi 0, %s126
      %s141 = sphi 0, %s127
      %s145 = sphi 0, %s145
      %s147 = sphi 0, %s145
      %s148 = sphi 0, %s147
      %s162 = sphi 0, %s148
      %s168 = sphi 0, %s170
      %s171 = sphi 0, %s168
      %s172 = sphi 0, %s171
      %s188 = sphi 0, %s172
    $region4: #{tpu_custom_call.1} parent=1 // loop_header_branch
      %25 = sbr.rel (%p23) target = $region8
    $region5: #{tpu_custom_call.1} parent=1 // loop_body
      %s27 = ssub.s32 %s22, 1
      %s28 = ssub.s32 %s22, 2
      %s29 = sadd.s32 %s22, 1
      %s30 = ssub.s32 %s22, %s29
      %p31 = scmp.eq.s32.totalorder %s30, 0
      %s33 = sadd.s32 %s32, 1
      %s34 = scalar_select %p31, %s32, %s33
      %p37 = pneg %p31
      %p38 = scmp.eq.s32.totalorder %s22, 1
      %p39 = por %p37, %p38
      %p40 = scmp.ne.s32.totalorder %s32, %s35
      %p41 = scmp.eq.s32.totalorder %s22, 0
      %p42 = por %p40, %p41
      %p43 = scmp.ne.s32.totalorder %s32, %s35
      %p44 = scmp.eq.s32.totalorder %s27, 1
      %p45 = por %p43, %p44
      %p46 = scmp.ne.s32.totalorder %s35, %s36
      %p47 = scmp.eq.s32.totalorder %s27, 0
      %p48 = por %p46, %p47
      %p49 = scmp.ne.s32.totalorder %s35, %s36
      %p50 = scmp.eq.s32.totalorder %s28, 1
      %p51 = por %p49, %p50
      %p53 = scmp.ne.s32.totalorder %s36, %s52
      %p54 = scmp.eq.s32.totalorder %s28, 0
      %p55 = por %p53, %p54
      %s56 = ssub.s32 %s22, %s29
      %p57 = scmp.eq.s32.totalorder %s56, 0
      %s59 = sadd.s32 %s58, 1
      %s60 = scalar_select %p57, %s58, %s59
      %p63 = pneg %p57
      %p64 = scmp.eq.s32.totalorder %s22, 1
      %p65 = por %p63, %p64
      %p66 = scmp.ne.s32.totalorder %s58, %s61
      %p67 = scmp.eq.s32.totalorder %s22, 0
      %p68 = por %p66, %p67
      %p69 = scmp.ne.s32.totalorder %s58, %s61
      %p70 = scmp.eq.s32.totalorder %s27, 1
      %p71 = por %p69, %p70
      %p72 = scmp.ne.s32.totalorder %s61, %s62
      %p73 = scmp.eq.s32.totalorder %s27, 0
      %p74 = por %p72, %p73
      %p75 = scmp.ne.s32.totalorder %s61, %s62
      %p76 = scmp.eq.s32.totalorder %s28, 1
      %p77 = por %p75, %p76
      %p79 = scmp.ne.s32.totalorder %s62, %s78
      %p80 = scmp.eq.s32.totalorder %s28, 0
      %p81 = por %p79, %p80
      %s83 = sadd.s32 %s82, 1
      %p86 = scmp.eq.s32.totalorder %s22, 1
      %p87 = scmp.ne.s32.totalorder %s82, %s84
      %p88 = scmp.eq.s32.totalorder %s22, 0
      %p89 = por %p87, %p88
      %p90 = scmp.ne.s32.totalorder %s82, %s84
      %p91 = scmp.eq.s32.totalorder %s27, 1
      %p92 = por %p90, %p91
      %p93 = scmp.ne.s32.totalorder %s84, %s85
      %p94 = scmp.eq.s32.totalorder %s27, 0
      %p95 = por %p93, %p94
      %p96 = scmp.ne.s32.totalorder %s84, %s85
      %p97 = scmp.eq.s32.totalorder %s28, 1
      %p98 = por %p96, %p97
      %p100 = scmp.ne.s32.totalorder %s85, %s99
      %p101 = scmp.eq.s32.totalorder %s28, 0
      %p102 = por %p100, %p101
      %s104 = sadd.s32 %s103, 1
      %p107 = scmp.eq.s32.totalorder %s22, 1
      %p108 = scmp.ne.s32.totalorder %s103, %s105
      %p109 = scmp.eq.s32.totalorder %s22, 0
      %p110 = por %p108, %p109
      %p111 = scmp.ne.s32.totalorder %s103, %s105
      %p112 = scmp.eq.s32.totalorder %s27, 1
      %p113 = por %p111, %p112
      %p114 = scmp.ne.s32.totalorder %s105, %s106
      %p115 = scmp.eq.s32.totalorder %s27, 0
      %p116 = por %p114, %p115
      %p117 = scmp.ne.s32.totalorder %s105, %s106
      %p118 = scmp.eq.s32.totalorder %s28, 1
      %p119 = por %p117, %p118
      %p121 = scmp.ne.s32.totalorder %s106, %s120
      %p122 = scmp.eq.s32.totalorder %s28, 0
      %p123 = por %p121, %p122
      %s125 = sadd.s32 %s124, 1
      %p128 = scmp.eq.s32.totalorder %s22, 1
      %p129 = scmp.ne.s32.totalorder %s124, %s126
      %p130 = scmp.eq.s32.totalorder %s22, 0
      %p131 = por %p129, %p130
      %p132 = scmp.ne.s32.totalorder %s124, %s126
      %p133 = scmp.eq.s32.totalorder %s27, 1
      %p134 = por %p132, %p133
      %p135 = scmp.ne.s32.totalorder %s126, %s127
      %p136 = scmp.eq.s32.totalorder %s27, 0
      %p137 = por %p135, %p136
      %p138 = scmp.ne.s32.totalorder %s126, %s127
      %p139 = scmp.eq.s32.totalorder %s28, 1
      %p140 = por %p138, %p139
      %p142 = scmp.ne.s32.totalorder %s127, %s141
      %p143 = scmp.eq.s32.totalorder %s28, 0
      %p144 = por %p142, %p143
      %s146 = sadd.s32 %s145, 1
      %p149 = scmp.eq.s32.totalorder %s22, 1
      %p150 = scmp.ne.s32.totalorder %s145, %s147
      %p151 = scmp.eq.s32.totalorder %s22, 0
      %p152 = por %p150, %p151
      %p153 = scmp.ne.s32.totalorder %s145, %s147
      %p154 = scmp.eq.s32.totalorder %s27, 1
      %p155 = por %p153, %p154
      %p156 = scmp.ne.s32.totalorder %s147, %s148
      %p157 = scmp.eq.s32.totalorder %s27, 0
      %p158 = por %p156, %p157
      %p159 = scmp.ne.s32.totalorder %s147, %s148
      %p160 = scmp.eq.s32.totalorder %s28, 1
      %p161 = por %p159, %p160
      %p163 = scmp.ne.s32.totalorder %s148, %s162
      %p164 = scmp.eq.s32.totalorder %s28, 0
      %p165 = por %p163, %p164
      %s166 = ssub.s32 %s22, %s29
      %p167 = scmp.eq.s32.totalorder %s166, 0
      %s169 = sadd.s32 %s168, 1
      %s170 = scalar_select %p167, %s168, %s169
      %p173 = pneg %p167
      %p174 = scmp.eq.s32.totalorder %s22, 1
      %p175 = por %p173, %p174
      %p176 = scmp.ne.s32.totalorder %s168, %s171
      %p177 = scmp.eq.s32.totalorder %s22, 0
      %p178 = por %p176, %p177
      %p179 = scmp.ne.s32.totalorder %s168, %s171
      %p180 = scmp.eq.s32.totalorder %s27, 1
      %p181 = por %p179, %p180
      %p182 = scmp.ne.s32.totalorder %s171, %s172
      %p183 = scmp.eq.s32.totalorder %s27, 0
      %p184 = por %p182, %p183
      %p185 = scmp.ne.s32.totalorder %s171, %s172
      %p186 = scmp.eq.s32.totalorder %s28, 1
      %p187 = por %p185, %p186
      %p189 = scmp.ne.s32.totalorder %s172, %s188
      %p190 = scmp.eq.s32.totalorder %s28, 0
      %p191 = por %p189, %p190
      %p192 = scmp.le.s32.totalorder 1, %s22
      %p193 = scmp.lt.s32.totalorder %s22, 3
      %p194 = pnand %p192, %p193
      %p195 = pneg %p194
      // Predicated region
      $region9: #{tpu_custom_call.1} parent=5 // pred_check
        _
      $region10: #{tpu_custom_call.1} parent=5 // pred_check_branch
        %197 = sbr.rel (%p194) target = $region12
      $region11: #{tpu_custom_call.1} parent=5 // pred_region
        %s198 = ssub.s32 %s22, 1
        // Predicated region
        $region13: #{tpu_custom_call.1} parent=11 // pred_check
          %p199 = pneg %p95
        $region14: #{tpu_custom_call.1} parent=11 // pred_check_branch
          %201 = sbr.rel (%p199) target = $region16
        $region15: #{tpu_custom_call.1} parent=11 // pred_region
          %s203 = ssub.s32 2048, 2048
          %204 = vsyncadd [#allocation6], %s203
          %s205 = sshll.u32 [#allocation7], 4
          %s206 = int_to_ptr.vmem [resolvable:$true] %s205
          %211 = dma.hbm_to_vmem [thread:$0]  %s2, 2048, %s206, [#allocation6], 128, 128, 8
        $region16: #{tpu_custom_call.1} parent=11 // pred_fallthru
          _
        // Predicated region
        $region17: #{tpu_custom_call.1} parent=11 // pred_check
          %p212 = pneg %p116
        $region18: #{tpu_custom_call.1} parent=11 // pred_check_branch
          %214 = sbr.rel (%p212) target = $region20
        $region19: #{tpu_custom_call.1} parent=11 // pred_region
          %s216 = ssub.s32 2048, 2048
          %217 = vsyncadd [#allocation9], %s216
          %s218 = sshll.u32 [#allocation8], 4
          %s219 = int_to_ptr.vmem [resolvable:$true] %s218
          %224 = dma.hbm_to_vmem [thread:$0]  %s3, 2048, %s219, [#allocation9], 128, 128, 8
        $region20: #{tpu_custom_call.1} parent=11 // pred_fallthru
          _
        // Predicated region
        $region21: #{tpu_custom_call.1} parent=11 // pred_check
          %p225 = pneg %p137
        $region22: #{tpu_custom_call.1} parent=11 // pred_check_branch
          %227 = sbr.rel (%p225) target = $region24
        $region23: #{tpu_custom_call.1} parent=11 // pred_region
          %s229 = ssub.s32 2048, 2048
          %230 = vsyncadd [#allocation9], %s229
          %s231 = sshll.u32 [#allocation10], 4
          %s232 = int_to_ptr.vmem [resolvable:$true] %s231
          %237 = dma.hbm_to_vmem [thread:$0]  %s4, 2048, %s232, [#allocation9], 128, 128, 8
        $region24: #{tpu_custom_call.1} parent=11 // pred_fallthru
          _
        // Predicated region
        $region25: #{tpu_custom_call.1} parent=11 // pred_check
          %p238 = pneg %p158
        $region26: #{tpu_custom_call.1} parent=11 // pred_check_branch
          %240 = sbr.rel (%p238) target = $region28
        $region27: #{tpu_custom_call.1} parent=11 // pred_region
          _
        $region28: #{tpu_custom_call.1} parent=11 // pred_fallthru
          _
      $region12: #{tpu_custom_call.1} parent=5 // pred_fallthru
        _
      %p241 = scmp.lt.s32.totalorder %s22, 2
      // Predicated region
      $region29: #{tpu_custom_call.1} parent=5 // pred_check
        %p242 = pneg %p241
      $region30: #{tpu_custom_call.1} parent=5 // pred_check_branch
        %244 = sbr.rel (%p242) target = $region32
      $region31: #{tpu_custom_call.1} parent=5 // pred_region
        // Predicated region
        $region33: #{tpu_custom_call.1} parent=31 // pred_check
          %p245 = pneg %p42
        $region34: #{tpu_custom_call.1} parent=31 // pred_check_branch
          %247 = sbr.rel (%p245) target = $region36
        $region35: #{tpu_custom_call.1} parent=31 // pred_region
          %s248 = sand.u32 %s32, 1
          %s249 = scalar_lea.sflag [#allocation3], %s248
          %s250 = sand.u32 %s32, 1
          %s251 = smul.addr %s250, 8
          %s252 = scalar_lea.vmem [#allocation2], %s251
          %s254 = ssub.s32 128, 128
          %255 = vsyncadd %s249, %s254
          %s256 = smul.addr %s22, 128
          %s257 = scalar_lea.hbm %s0, %s256
          %s259 = sshll.u32 %s252, 4
          %s260 = int_to_ptr.vmem [resolvable:$true] %s259
          %262 = dma.hbm_to_vmem [thread:$0]  %s257, 128, %s260, %s249
        $region36: #{tpu_custom_call.1} parent=31 // pred_fallthru
          _
        // Predicated region
        $region37: #{tpu_custom_call.1} parent=31 // pred_check
          %p263 = pneg %p68
        $region38: #{tpu_custom_call.1} parent=31 // pred_check_branch
          %265 = sbr.rel (%p263) target = $region40
        $region39: #{tpu_custom_call.1} parent=31 // pred_region
          %s266 = sand.u32 %s22, 1
          %s267 = scalar_lea.sflag [#allocation6], %s266
          %s268 = sand.u32 %s58, 1
          %s269 = smul.addr %s268, 8
          %s270 = scalar_lea.vmem [#allocation5], %s269
          %s272 = ssub.s32 128, 128
          %273 = vsyncadd %s267, %s272
          %s274 = smul.addr %s22, 128
          %s275 = scalar_lea.hbm %s1, %s274
          %s277 = sshll.u32 %s270, 4
          %s278 = int_to_ptr.vmem [resolvable:$true] %s277
          %280 = dma.hbm_to_vmem [thread:$0]  %s275, 128, %s278, %s267
        $region40: #{tpu_custom_call.1} parent=31 // pred_fallthru
          _
      $region32: #{tpu_custom_call.1} parent=5 // pred_fallthru
        _
      %p281 = scmp.le.s32.totalorder 1, %s22
      %p282 = scmp.lt.s32.totalorder %s22, 3
      %p283 = pnand %p281, %p282
      %p284 = pneg %p283
      // Predicated region
      $region41: #{tpu_custom_call.1} parent=5 // pred_check
        _
      $region42: #{tpu_custom_call.1} parent=5 // pred_check_branch
        %286 = sbr.rel (%p283) target = $region44
      $region43: #{tpu_custom_call.1} parent=5 // pred_region
        %s287 = ssub.s32 %s22, 1
        %s288 = sand.u32 %s35, 1
        %s289 = scalar_lea.sflag [#allocation3], %s288
        %s290 = sand.u32 %s35, 1
        %s291 = smul.addr %s290, 8
        %s292 = scalar_lea.vmem [#allocation2], %s291
        // Predicated region
        $region45: #{tpu_custom_call.1} parent=43 // pred_check
          %p293 = pneg %p48
        $region46: #{tpu_custom_call.1} parent=43 // pred_check_branch
          %295 = sbr.rel (%p293) target = $region48
        $region47: #{tpu_custom_call.1} parent=43 // pred_region
          %296 = dma.done %s289, 128
        $region48: #{tpu_custom_call.1} parent=43 // pred_fallthru
          _
        %s297 = sand.u32 %s27, 1
        %s298 = scalar_lea.sflag [#allocation6], %s297
        %s299 = sand.u32 %s61, 1
        %s300 = smul.addr %s299, 8
        %s301 = scalar_lea.vmem [#allocation5], %s300
        // Predicated region
        $region49: #{tpu_custom_call.1} parent=43 // pred_check
          %p302 = pneg %p74
        $region50: #{tpu_custom_call.1} parent=43 // pred_check_branch
          %304 = sbr.rel (%p302) target = $region52
        $region51: #{tpu_custom_call.1} parent=43 // pred_region
          %305 = dma.done %s298, 128
        $region52: #{tpu_custom_call.1} parent=43 // pred_fallthru
          _
        // Predicated region
        $region53: #{tpu_custom_call.1} parent=43 // pred_check
          %p306 = pneg %p95
        $region54: #{tpu_custom_call.1} parent=43 // pred_check_branch
          %308 = sbr.rel (%p306) target = $region56
        $region55: #{tpu_custom_call.1} parent=43 // pred_region
          %309 = dma.done [#allocation6], 2048
        $region56: #{tpu_custom_call.1} parent=43 // pred_fallthru
          _
        // Predicated region
        $region57: #{tpu_custom_call.1} parent=43 // pred_check
          %p310 = pneg %p116
        $region58: #{tpu_custom_call.1} parent=43 // pred_check_branch
          %312 = sbr.rel (%p310) target = $region60
        $region59: #{tpu_custom_call.1} parent=43 // pred_region
          %313 = dma.done [#allocation9], 2048
        $region60: #{tpu_custom_call.1} parent=43 // pred_fallthru
          _
        // Predicated region
        $region61: #{tpu_custom_call.1} parent=43 // pred_check
          %p314 = pneg %p137
        $region62: #{tpu_custom_call.1} parent=43 // pred_check_branch
          %316 = sbr.rel (%p314) target = $region64
        $region63: #{tpu_custom_call.1} parent=43 // pred_region
          %317 = dma.done [#allocation9], 2048
        $region64: #{tpu_custom_call.1} parent=43 // pred_fallthru
          _
        %s318 = sand.u32 %s35, 1
        %s319 = scalar_lea.sflag [#allocation3], %s318
        %s320 = sand.u32 %s35, 1
        %s321 = smul.addr %s320, 8
        %s322 = scalar_lea.vmem [#allocation2], %s321
        %p323 = pneg %p48
        %p324 = pneg %p45
        %s325 = sand.u32 %s27, 1
        %s326 = scalar_lea.sflag [#allocation6], %s325
        %s327 = sand.u32 %s61, 1
        %s328 = smul.addr %s327, 8
        %s329 = scalar_lea.vmem [#allocation5], %s328
        %p330 = pneg %p74
        %p331 = pneg %p71
        %p332 = pneg %p95
        %p333 = pneg %p92
        %p334 = pneg %p116
        %p335 = pneg %p113
        %p336 = pneg %p137
        %p337 = pneg %p134
        %p338 = pneg %p158
        %p339 = pneg %p155
        %p340 = pneg %p184
        %p341 = pneg %p181
        %s342 = sand.u32 %s171, 1
        %s343 = scalar_lea.sflag [#allocation4], %s342
        %s344 = sand.u32 %s171, 1
        %s345 = smul.addr %s344, 8
        %s346 = scalar_lea.vmem [#allocation11], %s345
        %v347 = vld [vmem:[%s292] sm:$0xff]
        %v348 = vld [vmem:[%s301] sm:$0xff]
        %v349 = vld [vmem:[#allocation7] sm:$0xff]
        %v350 = vld [vmem:[#allocation7 + $0x8] sm:$0xff]
        %v351 = vld [vmem:[#allocation7 + $0x10] sm:$0xff]
        %v352 = vld [vmem:[#allocation7 + $0x18] sm:$0xff]
        %v353 = vld [vmem:[#allocation7 + $0x20] sm:$0xff]
        %v354 = vld [vmem:[#allocation7 + $0x28] sm:$0xff]
        %v355 = vld [vmem:[#allocation7 + $0x30] sm:$0xff]
        %v356 = vld [vmem:[#allocation7 + $0x38] sm:$0xff]
        %v357 = vld [vmem:[#allocation7 + $0x40] sm:$0xff]
        %v358 = vld [vmem:[#allocation7 + $0x48] sm:$0xff]
        %v359 = vld [vmem:[#allocation7 + $0x50] sm:$0xff]
        %v360 = vld [vmem:[#allocation7 + $0x58] sm:$0xff]
        %v361 = vld [vmem:[#allocation7 + $0x60] sm:$0xff]
        %v362 = vld [vmem:[#allocation7 + $0x68] sm:$0xff]
        %v363 = vld [vmem:[#allocation7 + $0x70] sm:$0xff]
        %v364 = vld [vmem:[#allocation7 + $0x78] sm:$0xff]
        %365 = vmatprep.subr.mxu0 0.0
        %366 = vmatpush1.msra.mxu0 %v349
        %367 = vmatprep.subr.mxu0 0.0
        %368 = vmatpush1.msra.mxu0 %v350
        %369 = vmatprep.subr.mxu0 0.0
        %370 = vmatpush1.msra.mxu0 %v351
        %371 = vmatprep.subr.mxu0 0.0
        %372 = vmatpush1.msra.mxu0 %v352
        %373 = vmatprep.subr.mxu0 0.0
        %374 = vmatpush1.msra.mxu0 %v353
        %375 = vmatprep.subr.mxu0 0.0
        %376 = vmatpush1.msra.mxu0 %v354
        %377 = vmatprep.subr.mxu0 0.0
        %378 = vmatpush1.msra.mxu0 %v355
        %379 = vmatprep.subr.mxu0 0.0
        %380 = vmatpush1.msra.mxu0 %v356
        %381 = vmatprep.subr.mxu0 0.0
        %382 = vmatpush1.msra.mxu0 %v357
        %383 = vmatprep.subr.mxu0 0.0
        %384 = vmatpush1.msra.mxu0 %v358
        %385 = vmatprep.subr.mxu0 0.0
        %386 = vmatpush1.msra.mxu0 %v359
        %387 = vmatprep.subr.mxu0 0.0
        %388 = vmatpush1.msra.mxu0 %v360
        %389 = vmatprep.subr.mxu0 0.0
        %390 = vmatpush1.msra.mxu0 %v361
        %391 = vmatprep.subr.mxu0 0.0
        %392 = vmatpush1.msra.mxu0 %v362
        %393 = vmatprep.subr.mxu0 0.0
        %394 = vmatpush1.msra.mxu0 %v363
        %395 = vmatprep.subr.mxu0 0.0
        %396 = vmatpush1.msra.mxu0 %v364
        %397 = vmatprep.subr.mxu0 0.0
        %398 = vmatpush1.msra.mxu0 0.0
        %399 = vmatprep.subr.mxu0 0.0
        %400 = vmatpush1.msra.mxu0 0.0
        %401 = vmatprep.subr.mxu0 0.0
        %402 = vmatpush1.msra.mxu0 0.0
        %403 = vmatprep.subr.mxu0 0.0
        %404 = vmatpush1.msra.mxu0 0.0
        %405 = vmatprep.subr.mxu0 0.0
        %406 = vmatpush1.msra.mxu0 0.0
        %407 = vmatprep.subr.mxu0 0.0
        %408 = vmatpush1.msra.mxu0 0.0
        %409 = vmatprep.subr.mxu0 0.0
        %410 = vmatpush1.msra.mxu0 0.0
        %411 = vmatprep.subr.mxu0 0.0
        %412 = vmatpush1.msra.mxu0 0.0
        %413 = vmatprep.subr.mxu0 0.0
        %414 = vmatpush1.msra.mxu0 0.0
        %415 = vmatprep.subr.mxu0 0.0
        %416 = vmatpush1.msra.mxu0 0.0
        %417 = vmatprep.subr.mxu0 0.0
        %418 = vmatpush1.msra.mxu0 0.0
        %419 = vmatprep.subr.mxu0 0.0
        %420 = vmatpush1.msra.mxu0 0.0
        %421 = vmatprep.subr.mxu0 0.0
        %422 = vmatpush1.msra.mxu0 0.0
        %423 = vmatprep.subr.mxu0 0.0
        %424 = vmatpush1.msra.mxu0 0.0
        %425 = vmatprep.subr.mxu0 0.0
        %426 = vmatpush1.msra.mxu0 0.0
        %427 = vmatprep.subr.mxu0 0.0
        %428 = vmatpush1.msra.mxu0 0.0
        %429 = vmatprep.mubr.f32.mxu0 0.0
        %430 = vmatmul.mubr.f32.gmra.mrb[0].mxu0 %v347
        %v431 = vpop.f32.mrb[0].mxu0
        %v432 = vadd.f32 0.0, %v431
        %v433 = vpop.f32.mrb[0].mxu0
        %434 = vdwg.mxu0
        %v435 = vmul.f32 %v432, 0.01
        %v436 = vmax.f32 %v432, %v435
        %v437 = vld [vmem:[#allocation8] sm:$0xff]
        %v438 = vld [vmem:[#allocation8 + $0x8] sm:$0xff]
        %v439 = vld [vmem:[#allocation8 + $0x10] sm:$0xff]
        %v440 = vld [vmem:[#allocation8 + $0x18] sm:$0xff]
        %v441 = vld [vmem:[#allocation8 + $0x20] sm:$0xff]
        %v442 = vld [vmem:[#allocation8 + $0x28] sm:$0xff]
        %v443 = vld [vmem:[#allocation8 + $0x30] sm:$0xff]
        %v444 = vld [vmem:[#allocation8 + $0x38] sm:$0xff]
        %v445 = vld [vmem:[#allocation8 + $0x40] sm:$0xff]
        %v446 = vld [vmem:[#allocation8 + $0x48] sm:$0xff]
        %v447 = vld [vmem:[#allocation8 + $0x50] sm:$0xff]
        %v448 = vld [vmem:[#allocation8 + $0x58] sm:$0xff]
        %v449 = vld [vmem:[#allocation8 + $0x60] sm:$0xff]
        %v450 = vld [vmem:[#allocation8 + $0x68] sm:$0xff]
        %v451 = vld [vmem:[#allocation8 + $0x70] sm:$0xff]
        %v452 = vld [vmem:[#allocation8 + $0x78] sm:$0xff]
        %453 = vmatprep.subr.mxu0 0.0
        %454 = vmatpush1.msra.mxu0 %v437
        %455 = vmatprep.subr.mxu0 0.0
        %456 = vmatpush1.msra.mxu0 %v438
        %457 = vmatprep.subr.mxu0 0.0
        %458 = vmatpush1.msra.mxu0 %v439
        %459 = vmatprep.subr.mxu0 0.0
        %460 = vmatpush1.msra.mxu0 %v440
        %461 = vmatprep.subr.mxu0 0.0
        %462 = vmatpush1.msra.mxu0 %v441
        %463 = vmatprep.subr.mxu0 0.0
        %464 = vmatpush1.msra.mxu0 %v442
        %465 = vmatprep.subr.mxu0 0.0
        %466 = vmatpush1.msra.mxu0 %v443
        %467 = vmatprep.subr.mxu0 0.0
        %468 = vmatpush1.msra.mxu0 %v444
        %469 = vmatprep.subr.mxu0 0.0
        %470 = vmatpush1.msra.mxu0 %v445
        %471 = vmatprep.subr.mxu0 0.0
        %472 = vmatpush1.msra.mxu0 %v446
        %473 = vmatprep.subr.mxu0 0.0
        %474 = vmatpush1.msra.mxu0 %v447
        %475 = vmatprep.subr.mxu0 0.0
        %476 = vmatpush1.msra.mxu0 %v448
        %477 = vmatprep.subr.mxu0 0.0
        %478 = vmatpush1.msra.mxu0 %v449
        %479 = vmatprep.subr.mxu0 0.0
        %480 = vmatpush1.msra.mxu0 %v450
        %481 = vmatprep.subr.mxu0 0.0
        %482 = vmatpush1.msra.mxu0 %v451
        %483 = vmatprep.subr.mxu0 0.0
        %484 = vmatpush1.msra.mxu0 %v452
        %485 = vmatprep.subr.mxu0 0.0
        %486 = vmatpush1.msra.mxu0 0.0
        %487 = vmatprep.subr.mxu0 0.0
        %488 = vmatpush1.msra.mxu0 0.0
        %489 = vmatprep.subr.mxu0 0.0
        %490 = vmatpush1.msra.mxu0 0.0
        %491 = vmatprep.subr.mxu0 0.0
        %492 = vmatpush1.msra.mxu0 0.0
        %493 = vmatprep.subr.mxu0 0.0
        %494 = vmatpush1.msra.mxu0 0.0
        %495 = vmatprep.subr.mxu0 0.0
        %496 = vmatpush1.msra.mxu0 0.0
        %497 = vmatprep.subr.mxu0 0.0
        %498 = vmatpush1.msra.mxu0 0.0
        %499 = vmatprep.subr.mxu0 0.0
        %500 = vmatpush1.msra.mxu0 0.0
        %501 = vmatprep.subr.mxu0 0.0
        %502 = vmatpush1.msra.mxu0 0.0
        %503 = vmatprep.subr.mxu0 0.0
        %504 = vmatpush1.msra.mxu0 0.0
        %505 = vmatprep.subr.mxu0 0.0
        %506 = vmatpush1.msra.mxu0 0.0
        %507 = vmatprep.subr.mxu0 0.0
        %508 = vmatpush1.msra.mxu0 0.0
        %509 = vmatprep.subr.mxu0 0.0
        %510 = vmatpush1.msra.mxu0 0.0
        %511 = vmatprep.subr.mxu0 0.0
        %512 = vmatpush1.msra.mxu0 0.0
        %513 = vmatprep.subr.mxu0 0.0
        %514 = vmatpush1.msra.mxu0 0.0
        %515 = vmatprep.subr.mxu0 0.0
        %516 = vmatpush1.msra.mxu0 0.0
        %517 = vmatprep.mubr.f32.mxu0 0.0
        %518 = vmatmul.mubr.f32.gmra.mrb[0].mxu0 %v348
        %v519 = vpop.f32.mrb[0].mxu0
        %v520 = vadd.f32 0.0, %v519
        %v521 = vpop.f32.mrb[0].mxu0
        %522 = vdwg.mxu0
        %v523 = vmul.f32 %v520, 0.01
        %v524 = vmax.f32 %v520, %v523
        %v525 = vmul.f32 %v436, %v524
        %v526 = vld [vmem:[#allocation10] sm:$0xff]
        %v527 = vld [vmem:[#allocation10 + $0x8] sm:$0xff]
        %v528 = vld [vmem:[#allocation10 + $0x10] sm:$0xff]
        %v529 = vld [vmem:[#allocation10 + $0x18] sm:$0xff]
        %v530 = vld [vmem:[#allocation10 + $0x20] sm:$0xff]
        %v531 = vld [vmem:[#allocation10 + $0x28] sm:$0xff]
        %v532 = vld [vmem:[#allocation10 + $0x30] sm:$0xff]
        %v533 = vld [vmem:[#allocation10 + $0x38] sm:$0xff]
        %v534 = vld [vmem:[#allocation10 + $0x40] sm:$0xff]
        %v535 = vld [vmem:[#allocation10 + $0x48] sm:$0xff]
        %v536 = vld [vmem:[#allocation10 + $0x50] sm:$0xff]
        %v537 = vld [vmem:[#allocation10 + $0x58] sm:$0xff]
        %v538 = vld [vmem:[#allocation10 + $0x60] sm:$0xff]
        %v539 = vld [vmem:[#allocation10 + $0x68] sm:$0xff]
        %v540 = vld [vmem:[#allocation10 + $0x70] sm:$0xff]
        %v541 = vld [vmem:[#allocation10 + $0x78] sm:$0xff]
        %v542 = vld [vmem:[%s5] sm:$0x1]
        %v544 = vlaneseq
        %v545 = vshrl.u32 %v544, 7
        %v546 = vsub.s32 0, %v545
        %v547 = vrot.slane %v542, %v546
        %549 = vmatprep.subr.mxu0 0.0
        %550 = vmatpush1.msra.mxu0 %v526
        %551 = vmatprep.subr.mxu0 0.0
        %552 = vmatpush1.msra.mxu0 %v527
        %553 = vmatprep.subr.mxu0 0.0
        %554 = vmatpush1.msra.mxu0 %v528
        %555 = vmatprep.subr.mxu0 0.0
        %556 = vmatpush1.msra.mxu0 %v529
        %557 = vmatprep.subr.mxu0 0.0
        %558 = vmatpush1.msra.mxu0 %v530
        %559 = vmatprep.subr.mxu0 0.0
        %560 = vmatpush1.msra.mxu0 %v531
        %561 = vmatprep.subr.mxu0 0.0
        %562 = vmatpush1.msra.mxu0 %v532
        %563 = vmatprep.subr.mxu0 0.0
        %564 = vmatpush1.msra.mxu0 %v533
        %565 = vmatprep.subr.mxu0 0.0
        %566 = vmatpush1.msra.mxu0 %v534
        %567 = vmatprep.subr.mxu0 0.0
        %568 = vmatpush1.msra.mxu0 %v535
        %569 = vmatprep.subr.mxu0 0.0
        %570 = vmatpush1.msra.mxu0 %v536
        %571 = vmatprep.subr.mxu0 0.0
        %572 = vmatpush1.msra.mxu0 %v537
        %573 = vmatprep.subr.mxu0 0.0
        %574 = vmatpush1.msra.mxu0 %v538
        %575 = vmatprep.subr.mxu0 0.0
        %576 = vmatpush1.msra.mxu0 %v539
        %577 = vmatprep.subr.mxu0 0.0
        %578 = vmatpush1.msra.mxu0 %v540
        %579 = vmatprep.subr.mxu0 0.0
        %580 = vmatpush1.msra.mxu0 %v541
        %581 = vmatprep.subr.mxu0 0.0
        %582 = vmatpush1.msra.mxu0 0.0
        %583 = vmatprep.subr.mxu0 0.0
        %584 = vmatpush1.msra.mxu0 0.0
        %585 = vmatprep.subr.mxu0 0.0
        %586 = vmatpush1.msra.mxu0 0.0
        %587 = vmatprep.subr.mxu0 0.0
        %588 = vmatpush1.msra.mxu0 0.0
        %589 = vmatprep.subr.mxu0 0.0
        %590 = vmatpush1.msra.mxu0 0.0
        %591 = vmatprep.subr.mxu0 0.0
        %592 = vmatpush1.msra.mxu0 0.0
        %593 = vmatprep.subr.mxu0 0.0
        %594 = vmatpush1.msra.mxu0 0.0
        %595 = vmatprep.subr.mxu0 0.0
        %596 = vmatpush1.msra.mxu0 0.0
        %597 = vmatprep.subr.mxu0 0.0
        %598 = vmatpush1.msra.mxu0 0.0
        %599 = vmatprep.subr.mxu0 0.0
        %600 = vmatpush1.msra.mxu0 0.0
        %601 = vmatprep.subr.mxu0 0.0
        %602 = vmatpush1.msra.mxu0 0.0
        %603 = vmatprep.subr.mxu0 0.0
        %604 = vmatpush1.msra.mxu0 0.0
        %605 = vmatprep.subr.mxu0 0.0
        %606 = vmatpush1.msra.mxu0 0.0
        %607 = vmatprep.subr.mxu0 0.0
        %608 = vmatpush1.msra.mxu0 0.0
        %609 = vmatprep.subr.mxu0 0.0
        %610 = vmatpush1.msra.mxu0 0.0
        %611 = vmatprep.subr.mxu0 0.0
        %612 = vmatpush1.msra.mxu0 0.0
        %613 = vmatprep.mubr.f32.mxu0 0.0
        %614 = vmatmul.mubr.f32.gmra.mrb[0].mxu0 %v525
        %v615 = vpop.f32.mrb[0].mxu0
        %v616 = vadd.f32 %v547, %v615
        %v617 = vpop.f32.mrb[0].mxu0
        %618 = vdwg.mxu0
        %619 = vst [vmem:[%s346] sm:$0xff] %v616
        %s620 = sand.u32 %s171, 1
        %s621 = scalar_lea.sflag [#allocation4], %s620
        %s622 = sand.u32 %s171, 1
        %s623 = smul.addr %s622, 8
        %s624 = scalar_lea.vmem [#allocation11], %s623
        // Predicated region
        $region65: #{tpu_custom_call.1} parent=43 // pred_check
          %p625 = pneg %p181
        $region66: #{tpu_custom_call.1} parent=43 // pred_check_branch
          %627 = sbr.rel (%p625) target = $region68
        $region67: #{tpu_custom_call.1} parent=43 // pred_region
          %s629 = ssub.s32 128, 128
          %630 = vsyncadd %s621, %s629
          %s631 = smul.addr %s27, 128
          %s632 = scalar_lea.hbm %s6, %s631
          %s634 = sshll.u32 %s624, 4
          %s635 = int_to_ptr.vmem [resolvable:$true] %s634
          %637 = dma.vmem_to_hbm [thread:$0]  %s635, 128, %s632, %s621
        $region68: #{tpu_custom_call.1} parent=43 // pred_fallthru
          _
      $region44: #{tpu_custom_call.1} parent=5 // pred_fallthru
        _
      %p638 = scmp.le.s32.totalorder 2, %s22
      // Predicated region
      $region69: #{tpu_custom_call.1} parent=5 // pred_check
        %p639 = pneg %p638
      $region70: #{tpu_custom_call.1} parent=5 // pred_check_branch
        %641 = sbr.rel (%p639) target = $region72
      $region71: #{tpu_custom_call.1} parent=5 // pred_region
        %s642 = ssub.s32 %s22, 2
        // Predicated region
        $region73: #{tpu_custom_call.1} parent=71 // pred_check
          %p643 = pneg %p187
        $region74: #{tpu_custom_call.1} parent=71 // pred_check_branch
          %645 = sbr.rel (%p643) target = $region76
        $region75: #{tpu_custom_call.1} parent=71 // pred_region
          %s646 = sand.u32 %s172, 1
          %s647 = scalar_lea.sflag [#allocation4], %s646
          %s648 = sand.u32 %s172, 1
          %s649 = smul.addr %s648, 8
          %s650 = scalar_lea.vmem [#allocation11], %s649
          %651 = dma.done %s647, 128
        $region76: #{tpu_custom_call.1} parent=71 // pred_fallthru
          _
      $region72: #{tpu_custom_call.1} parent=5 // pred_fallthru
        _
    $region6: #{tpu_custom_call.1} parent=1 // loop_footer
      %s26 = sadd.s32 1, %s22
    $region7: #{tpu_custom_call.1} parent=1 // loop_footer_branch
      %21 = sbr.rel target = $region3
    $region8: #{tpu_custom_call.1} parent=1 // loop_exit
      _
    %652 = vsyncpa [#allocation3], 1
    %s653 = scalar_lea.sflag [#allocation3], 1
    %654 = vsyncpa %s653, 1
    %655 = vsyncpa [#allocation6], 1
    %s656 = scalar_lea.sflag [#allocation6], 1
    %657 = vsyncpa %s656, 1
    %658 = vsyncpa [#allocation9], 1
    %659 = vsyncpa [#allocation4], 1
    %s660 = scalar_lea.sflag [#allocation4], 1
    %661 = vsyncpa %s660, 1

</llo_original>
